<compile_context>
chip_gen: v7x
topology: tpu7x:2x2x1
jax: 0.10.0
libtpu: 0.0.40
codegen_flags: <defaults>
</compile_context>

<pallas_src>
import functools
import math

import jax
import jax.numpy as jnp
from jax.experimental import pallas as pl
from jax.experimental.pallas import tpu as pltpu

_LANE = 128
_TR_MAX = 256                     # row tile (bboxes1 boxes), sublane dim
_TC_MAX = 1024                    # col tile (bboxes2 boxes), lane dim
_VMEM_LIMIT = 40 * 1024 * 1024    # > v5e's 16 MiB default, < v7x's 64 MiB/TC


def _round_up(x, m):
    return (x + m - 1) // m * m


def _iou_metric_tile(b1, b2, mode):
    """b1: (TR, 4) row-tile boxes [x1,y1,x2,y2]; b2: (4, TC) col-tile boxes.

    Returns the (TR, TC) pairwise metric (IoU / GIoU / DIoU / CIoU).
    """
    # Per-row (TR,1) and per-column (1,TC) quantities: O(TR)+O(TC) per tile,
    # <1% of the O(TR*TC) work, so no cross-step hoisting is needed.
    x1a, y1a, x2a, y2a = b1[:, 0:1], b1[:, 1:2], b1[:, 2:3], b1[:, 3:4]
    x1b, y1b, x2b, y2b = b2[0:1, :], b2[1:2, :], b2[2:3, :], b2[3:4, :]

    area1 = (x2a - x1a) * (y2a - y1a)          # (TR, 1)
    area2 = (x2b - x1b) * (y2b - y1b)          # (1, TC)

    # Intersection / union (all (TR, TC))
    iw = jnp.maximum(jnp.minimum(x2a, x2b) - jnp.maximum(x1a, x1b), 0.0)
    ih = jnp.maximum(jnp.minimum(y2a, y2b) - jnp.maximum(y1a, y1b), 0.0)
    inter = iw * ih
    union = area1 + area2 - inter
    # approx reciprocal: single EUP push instead of full-precision divide.
    ious = jnp.clip(inter * pl.reciprocal(union, approx=True), 0.0, 1.0)

    if mode == 1:
        return ious

    # Enclosing box extents
    ow = jnp.maximum(jnp.maximum(x2a, x2b) - jnp.minimum(x1a, x1b), 0.0)
    oh = jnp.maximum(jnp.maximum(y2a, y2b) - jnp.minimum(y1a, y1b), 0.0)

    if mode == 2:
        outer = ow * oh
        gious = ious - (outer - union) * pl.reciprocal(outer, approx=True)
        return jnp.clip(gious, -1.0, 1.0)

    # Center-distance term:  ((ca - cb)/2)^2 == 0.25 * (ca - cb)^2
    sxa, sya = x1a + x2a, y1a + y2a            # (TR, 1)
    sxb, syb = x1b + x2b, y1b + y2b            # (1, TC)
    inter_diag = 0.25 * ((sxa - sxb) ** 2 + (sya - syb) ** 2)
    outer_diag = ow * ow + oh * oh
    u = inter_diag * pl.reciprocal(outer_diag, approx=True)

    if mode == 3:
        return jnp.clip(ious - u, -1.0, 1.0)

    if mode == 4:
        w1, h1 = x2a - x1a, y2a - y1a          # (TR, 1)
        w2, h2 = x2b - x1b, y2b - y1b          # (1, TC)
        atan1 = jnp.arctan(w1 / h1)            # (TR, 1)  EUP, O(TR)
        atan2 = jnp.arctan(w2 / h2)            # (1, TC)  EUP, O(TC)
        v = (4.0 / (math.pi ** 2)) * (atan2 - atan1) ** 2
        s = (ious > 0.5).astype(jnp.float32)
        # Exact divide for the alpha denominator: it can be ~0 when ious~1 and
        # v~0, where the approx reciprocal misbehaves vs the exact reference.
        # 1 of 3 per-element divides in mode 4 -> negligible extra cost.
        alpha = s * v / (1.0 - ious + v)
        return jnp.clip(ious - u - alpha * v, -1.0, 1.0)

    raise ValueError("mode must be in {1, 2, 3, 4}")


def _iou_loss_kernel(b1_ref, b2_ref, out_ref, acc_ref, *, mode, rows, cols, tr, tc):
    i = pl.program_id(0)          # row-tile index   ("parallel")
    j = pl.program_id(1)          # col-tile index   (innermost reduction, "arbitrary")
    n_col = pl.num_programs(1)

    @pl.when(j == 0)
    def _():
        acc_ref[...] = jnp.zeros_like(acc_ref)

    metric = _iou_metric_tile(b1_ref[...], b2_ref[...], mode)   # (tr, tc)

    def _accumulate(mask_cols):
        m = metric
        if mask_cols:
            # 1-D lane mask (O(TC) iota+compare), only on the ragged last
            # column tile; interior tiles never pay for it.
            cid = j * tc + jax.lax.broadcasted_iota(jnp.int32, (1, tc), 1)
            m = jnp.where(cid < cols, m, 0.0)
        # Per-tile cross-lane reduce on the (otherwise idle) XLU; only the
        # (tr, 1) accumulator is live across col tiles -> no per-vreg
        # load/add/store of a full (tr, tc) scratch.
        acc_ref[...] += jnp.sum(m, axis=1, keepdims=True)

    if cols % tc != 0:            # static: interior tiles skip masking entirely
        @pl.when(j == n_col - 1)
        def _():
            _accumulate(True)

        @pl.when(j != n_col - 1)
        def _():
            _accumulate(False)
    else:
        _accumulate(False)

    @pl.when(j == n_col - 1)
    def _():
        acc = acc_ref[...]
        if rows % tr != 0:        # static: row masking deferred to O(tr) epilogue
            rid = i * tr + jax.lax.broadcasted_iota(jnp.int32, (tr, 1), 0)
            acc = jnp.where(rid < rows, acc, 0.0)
        # Single cross-sublane reduce per row tile, written as one lane-dense
        # (8, 128) slab; the wrapper reads element [0, 0] of each slab.
        out_ref[...] = jnp.full((8, _LANE), jnp.sum(acc), jnp.float32)


def _xywh2xyxy(b):
    cx, cy, w, h = b[:, 0], b[:, 1], b[:, 2], b[:, 3]
    return jnp.stack([cx - w / 2, cy - h / 2, cx + w / 2, cy + h / 2], axis=1)


def iou_loss(bboxes1, bboxes2, mode=1, xyxy=True):
    rows = int(bboxes1.shape[0])
    cols = int(bboxes2.shape[0])
    if rows * cols == 0:
        return jnp.zeros((rows, cols), dtype=jnp.float32)
    if not xyxy:
        bboxes1 = _xywh2xyxy(bboxes1)
        bboxes2 = _xywh2xyxy(bboxes2)

    b1 = bboxes1.astype(jnp.float32)           # (R, 4)
    b2 = bboxes2.astype(jnp.float32)           # (C, 4)

    # Row tile: sublane dim, multiple of 8 is enough.
    tr = min(_TR_MAX, _round_up(rows, 8))
    # v7x megacore: ensure >= 2 "parallel" row tiles when rows > 128 so the
    # second TensorCore gets work (harmless on single-TC v5e/v6e).
    if _round_up(rows, tr) // tr < 2 and tr > 128:
        tr = 128
    # Col tile: lane dim, multiple of 128; large TC amortizes the ~0.35 us
    # per-grid-step overhead (the (4, tc) b2 slab is only ~16 KiB at 1024).
    tc = min(_TC_MAX, _round_up(cols, _LANE))

    rp = _round_up(rows, tr)
    cp = _round_up(cols, tc)
    n_row_tiles = rp // tr
    n_col_tiles = cp // tc

    # Pad with valid dummy boxes [0,0,1,1] (finite everywhere; masked/zeroed
    # inside the kernel, never generating NaN/Inf).
    dummy = jnp.array([0.0, 0.0, 1.0, 1.0], jnp.float32)
    if rp != rows:
        b1 = jnp.concatenate([b1, jnp.broadcast_to(dummy, (rp - rows, 4))], axis=0)
    if cp != cols:
        b2 = jnp.concatenate([b2, jnp.broadcast_to(dummy, (cp - cols, 4))], axis=0)

    b2t = b2.T                                 # (4, Cp): boxes on lanes

    kernel = functools.partial(
        _iou_loss_kernel, mode=mode, rows=rows, cols=cols, tr=tr, tc=tc)

    flops_per_pair = {1: 18, 2: 28, 3: 34, 4: 48}[mode]
    transc_per_pair = {1: 1, 2: 2, 3: 3, 4: 4}[mode]
    cost = pl.CostEstimate(
        flops=flops_per_pair * rp * cp,
        transcendentals=transc_per_pair * rp * cp
        + (rp * n_col_tiles + cp * n_row_tiles),
        bytes_accessed=(rp + cp) * 4 * 4 + n_row_tiles * 8 * _LANE * 4,
    )

    partials = pl.pallas_call(
        kernel,
        out_shape=jax.ShapeDtypeStruct((n_row_tiles * 8, _LANE), jnp.float32),
        grid=(n_row_tiles, n_col_tiles),
        in_specs=[
            pl.BlockSpec((tr, 4), lambda i, j: (i, 0)),   # bboxes1 row slab
            pl.BlockSpec((4, tc), lambda i, j: (0, j)),   # bboxes2 col slab
        ],
        out_specs=pl.BlockSpec((8, _LANE), lambda i, j: (i, 0)),
        scratch_shapes=[pltpu.VMEM((tr, 1), jnp.float32)],
        compiler_params=pltpu.CompilerParams(
            dimension_semantics=("parallel", "arbitrary"),
            vmem_limit_bytes=_VMEM_LIMIT,
        ),
        cost_estimate=cost,
    )(b1, b2t)

    total = jnp.sum(partials[0::8, 0])         # one partial per row tile
    return 1.0 - total / (rows * cols)


def _iou_loss_ref(bboxes1, bboxes2, mode=1):
    # Pure-JAX reference mirroring the PyTorch forward (exact divides).
    b1 = bboxes1.astype(jnp.float32)
    b2 = bboxes2.astype(jnp.float32)
    rows, cols = b1.shape[0], b2.shape[0]
    area1 = (b1[:, 2] - b1[:, 0]) * (b1[:, 3] - b1[:, 1])
    area2 = (b2[:, 2] - b2[:, 0]) * (b2[:, 3] - b2[:, 1])
    inter_max = jnp.minimum(b1[:, None, 2:], b2[None, :, 2:])
    inter_min = jnp.maximum(b1[:, None, :2], b2[None, :, :2])
    inter = jnp.prod(jnp.clip(inter_max - inter_min, 0.0, None), axis=2)
    union = area1[:, None] + area2[None, :] - inter
    ious = jnp.clip(inter / union, 0.0, 1.0)
    if mode == 1:
        return jnp.sum(1.0 - ious) / (rows * cols)
    out_max = jnp.maximum(b1[:, None, 2:], b2[None, :, 2:])
    out_min = jnp.minimum(b1[:, None, :2], b2[None, :, :2])
    if mode == 2:
        outer = jnp.prod(jnp.clip(out_max - out_min, 0.0, None), axis=2)
        g = jnp.clip(ious - (outer - union) / outer, -1.0, 1.0)
        return jnp.sum(1.0 - g) / (rows * cols)
    inter_diag = ((b1[:, None, 0] + b1[:, None, 2]) / 2 - (b2[:, 0] + b2[:, 2]) / 2) ** 2 + \
                 ((b1[:, None, 1] + b1[:, None, 3]) / 2 - (b2[:, 1] + b2[:, 3]) / 2) ** 2
    outer_diag = jnp.clip(out_max[..., 0] - out_min[..., 0], 0.0, None) ** 2 + \
                 jnp.clip(out_max[..., 1] - out_min[..., 1], 0.0, None) ** 2
    u = inter_diag / outer_diag
    if mode == 3:
        d = jnp.clip(ious - u, -1.0, 1.0)
        return jnp.sum(1.0 - d) / (rows * cols)
    w2 = b2[:, 2] - b2[:, 0]
    h2 = b2[:, 3] - b2[:, 1]
    w1 = b1[:, None, 2] - b1[:, None, 0]
    h1 = b1[:, None, 3] - b1[:, None, 1]
    v = 4.0 / math.pi ** 2 * (jnp.arctan(w2 / h2) - jnp.arctan(w1 / h1)) ** 2
    s = (ious > 0.5).astype(jnp.float32)
    alpha = s * v / (1.0 - ious + v)
    c = jnp.clip(ious - u - alpha * v, -1.0, 1.0)
    return jnp.sum(1.0 - c) / (rows * cols)


if __name__ == "__main__":
    key = jax.random.PRNGKey(0)

    def make_boxes(k, n):
        k1, k2 = jax.random.split(k)
        xy1 = jax.random.uniform(k1, (n, 2), minval=0.0, maxval=10.0)
        wh = jax.random.uniform(k2, (n, 2), minval=1.0, maxval=5.0)
        return jnp.concatenate([xy1, xy1 + wh], axis=1)    # valid xyxy boxes

    kA, kB, kC, kD = jax.random.split(key, 4)
    cases = [
        (make_boxes(kA, 16), make_boxes(kB, 8)),      # single tile, col masking
        (make_boxes(kC, 300), make_boxes(kD, 200)),   # multi row-tile + row & col masks
    ]

    # Approx EUP reciprocals drift slightly from the exact-divide reference,
    # so the tolerance is looser than 1e-5 (still catches structural bugs).
    atol = rtol = 1e-2
    ok = True
    for ci, (b1, b2) in enumerate(cases):
        for mode in (1, 2, 3, 4):
            got = jax.block_until_ready(iou_loss(b1, b2, mode=mode))
            want = jax.block_until_ready(_iou_loss_ref(b1, b2, mode=mode))
            if not jnp.allclose(got, want, atol=atol, rtol=rtol):
                ok = False
                print(f"case={ci} mode={mode} mismatch: kernel={got} ref={want}")

    # xywh input path (conversion happens in the wrapper).
    b1, b2 = cases[0]
    to_xywh = lambda b: jnp.stack(
        [(b[:, 0] + b[:, 2]) / 2, (b[:, 1] + b[:, 3]) / 2,
         b[:, 2] - b[:, 0], b[:, 3] - b[:, 1]], axis=1)
    got = jax.block_until_ready(iou_loss(to_xywh(b1), to_xywh(b2), mode=1, xyxy=False))
    want = jax.block_until_ready(_iou_loss_ref(b1, b2, mode=1))
    if not jnp.allclose(got, want, atol=atol, rtol=rtol):
        ok = False
        print(f"xywh mode=1 mismatch: kernel={got} ref={want}")

    if ok:
        print("KERNEL_OK")
</pallas_src>

<mosaic_0001>
module attributes {stable_mosaic.version = 11 : i64} {
  func.func @_iou_loss_kernel(%arg0: i32, %arg1: i32, %arg2: memref<16x4xf32, #tpu.memory_space<vmem>>, %arg3: memref<4x128xf32, #tpu.memory_space<vmem>>, %arg4: memref<8x128xf32, #tpu.memory_space<vmem>>, %arg5: memref<16x1xf32, #tpu.memory_space<vmem>>) attributes {dimension_semantics = [#tpu.dimension_semantics<parallel>, #tpu.dimension_semantics<arbitrary>], iteration_bounds = array<i64: 1, 1>, scalar_prefetch = 0 : i64, scratch_operands = 1 : i64, tpu.core_type = #tpu.core_type<tc>, window_params = [{transform_indices = @transform_0, window_bounds = array<i64: 16, 4>}, {transform_indices = @transform_1, window_bounds = array<i64: 4, 128>}, {transform_indices = @transform_2, window_bounds = array<i64: 8, 128>}]} {
    %c0_i32 = arith.constant 0 : i32
    %0 = arith.cmpi eq, %arg1, %c0_i32 : i32
    %1 = arith.extui %0 : i1 to i32
    %c0_i32_0 = arith.constant 0 : i32
    %2 = arith.cmpi ne, %1, %c0_i32_0 : i32
    scf.if %2 {
      %cst_13 = arith.constant 0.000000e+00 : f32
      %57 = vector.broadcast %cst_13 : f32 to vector<16x1xf32>
      %c0_14 = arith.constant 0 : index
      %c0_15 = arith.constant 0 : index
      %58 = vector.load %arg5[%c0_14, %c0_15] : memref<16x1xf32, #tpu.memory_space<vmem>>, vector<16x1xf32>
      tpu.vector_store %arg5[%c0_14, %c0_15], %57 {strides = array<i32>} : memref<16x1xf32, #tpu.memory_space<vmem>>, vector<16x1xf32>,
    } else {
    }
    %c0 = arith.constant 0 : index
    %c0_1 = arith.constant 0 : index
    %3 = vector.load %arg2[%c0, %c0_1] : memref<16x4xf32, #tpu.memory_space<vmem>>, vector<16x4xf32>
    %c0_2 = arith.constant 0 : index
    %c0_3 = arith.constant 0 : index
    %4 = vector.load %arg3[%c0_2, %c0_3] : memref<4x128xf32, #tpu.memory_space<vmem>>, vector<4x128xf32>
    %5 = vector.extract_strided_slice %3 {offsets = [0, 0], sizes = [16, 1], strides = [1, 1]} : vector<16x4xf32> to vector<16x1xf32>
    %6 = vector.extract_strided_slice %3 {offsets = [0, 1], sizes = [16, 1], strides = [1, 1]} : vector<16x4xf32> to vector<16x1xf32>
    %7 = vector.extract_strided_slice %3 {offsets = [0, 2], sizes = [16, 1], strides = [1, 1]} : vector<16x4xf32> to vector<16x1xf32>
    %8 = vector.extract_strided_slice %3 {offsets = [0, 3], sizes = [16, 1], strides = [1, 1]} : vector<16x4xf32> to vector<16x1xf32>
    %9 = vector.extract_strided_slice %4 {offsets = [0, 0], sizes = [1, 128], strides = [1, 1]} : vector<4x128xf32> to vector<1x128xf32>
    %10 = vector.extract_strided_slice %4 {offsets = [1, 0], sizes = [1, 128], strides = [1, 1]} : vector<4x128xf32> to vector<1x128xf32>
    %11 = vector.extract_strided_slice %4 {offsets = [2, 0], sizes = [1, 128], strides = [1, 1]} : vector<4x128xf32> to vector<1x128xf32>
    %12 = vector.extract_strided_slice %4 {offsets = [3, 0], sizes = [1, 128], strides = [1, 1]} : vector<4x128xf32> to vector<1x128xf32>
    %13 = arith.subf %7, %5 : vector<16x1xf32>
    %14 = arith.subf %8, %6 : vector<16x1xf32>
    %15 = arith.mulf %13, %14 : vector<16x1xf32>
    %16 = arith.subf %11, %9 : vector<1x128xf32>
    %17 = arith.subf %12, %10 : vector<1x128xf32>
    %18 = arith.mulf %16, %17 : vector<1x128xf32>
    %19 = vector.broadcast %7 : vector<16x1xf32> to vector<16x128xf32>
    %20 = vector.broadcast %11 : vector<1x128xf32> to vector<16x128xf32>
    %21 = arith.minimumf %19, %20 : vector<16x128xf32>
    %22 = vector.broadcast %5 : vector<16x1xf32> to vector<16x128xf32>
    %23 = vector.broadcast %9 : vector<1x128xf32> to vector<16x128xf32>
    %24 = arith.maximumf %22, %23 : vector<16x128xf32>
    %25 = arith.subf %21, %24 : vector<16x128xf32>
    %cst = arith.constant 0.000000e+00 : f32
    %26 = vector.broadcast %cst : f32 to vector<16x128xf32>
    %27 = arith.maximumf %25, %26 : vector<16x128xf32>
    %28 = vector.broadcast %8 : vector<16x1xf32> to vector<16x128xf32>
    %29 = vector.broadcast %12 : vector<1x128xf32> to vector<16x128xf32>
    %30 = arith.minimumf %28, %29 : vector<16x128xf32>
    %31 = vector.broadcast %6 : vector<16x1xf32> to vector<16x128xf32>
    %32 = vector.broadcast %10 : vector<1x128xf32> to vector<16x128xf32>
    %33 = arith.maximumf %31, %32 : vector<16x128xf32>
    %34 = arith.subf %30, %33 : vector<16x128xf32>
    %cst_4 = arith.constant 0.000000e+00 : f32
    %35 = vector.broadcast %cst_4 : f32 to vector<16x128xf32>
    %36 = arith.maximumf %34, %35 : vector<16x128xf32>
    %37 = arith.mulf %27, %36 : vector<16x128xf32>
    %38 = vector.broadcast %15 : vector<16x1xf32> to vector<16x128xf32>
    %39 = vector.broadcast %18 : vector<1x128xf32> to vector<16x128xf32>
    %40 = arith.addf %38, %39 : vector<16x128xf32>
    %41 = arith.subf %40, %37 : vector<16x128xf32>
    %42 = tpu.reciprocal %41 {approx = true} : vector<16x128xf32> -> vector<16x128xf32>
    %43 = arith.mulf %37, %42 : vector<16x128xf32>
    %cst_5 = arith.constant 0.000000e+00 : f32
    %cst_6 = arith.constant 1.000000e+00 : f32
    %44 = vector.broadcast %cst_5 : f32 to vector<16x128xf32>
    %45 = arith.maximumf %44, %43 : vector<16x128xf32>
    %46 = vector.broadcast %cst_6 : f32 to vector<16x128xf32>
    %47 = arith.minimumf %46, %45 : vector<16x128xf32>
    %c0_i32_7 = arith.constant 0 : i32
    %48 = arith.cmpi eq, %arg1, %c0_i32_7 : i32
    %49 = arith.extui %48 : i1 to i32
    %c0_i32_8 = arith.constant 0 : i32
    %50 = arith.cmpi ne, %49, %c0_i32_8 : i32
    scf.if %50 {
      %c128_i32 = arith.constant 128 : i32
      %57 = arith.muli %arg1, %c128_i32 : i32
      %58 = tpu.iota {dimensions = array<i32: 1>} : vector<1x128xi32>
      %59 = vector.broadcast %57 : i32 to vector<1x128xi32>
      %60 = arith.addi %59, %58 : vector<1x128xi32>
      %c8_i32 = arith.constant 8 : i32
      %61 = vector.broadcast %c8_i32 : i32 to vector<1x128xi32>
      %62 = arith.cmpi slt, %60, %61 : vector<1x128xi32>
      %cst_13 = arith.constant 0.000000e+00 : f32
      %63 = vector.shape_cast %62 : vector<1x128xi1> to vector<1x128xi1>
      %64 = vector.broadcast %63 : vector<1x128xi1> to vector<16x128xi1>
      %65 = vector.broadcast %cst_13 : f32 to vector<16x128xf32>
      %66 = arith.select %64, %47, %65 : vector<16x128xi1>, vector<16x128xf32>
      %c0_14 = arith.constant 0 : index
      %c0_15 = arith.constant 0 : index
      %67 = vector.load %arg5[%c0_14, %c0_15] : memref<16x1xf32, #tpu.memory_space<vmem>>, vector<16x1xf32>
      %cst_16 = arith.constant dense<0.000000e+00> : vector<16xf32>
      %68 = vector.multi_reduction <add>, %66, %cst_16 [1] : vector<16x128xf32> to vector<16xf32>
      %69 = vector.shape_cast %68 : vector<16xf32> to vector<16x1xf32>
      %70 = arith.addf %67, %69 : vector<16x1xf32>
      %c0_17 = arith.constant 0 : index
      %c0_18 = arith.constant 0 : index
      %71 = vector.load %arg5[%c0_17, %c0_18] : memref<16x1xf32, #tpu.memory_space<vmem>>, vector<16x1xf32>
      tpu.vector_store %arg5[%c0_17, %c0_18], %70 {strides = array<i32>} : memref<16x1xf32, #tpu.memory_space<vmem>>, vector<16x1xf32>,
    } else {
    }
    %c0_i32_9 = arith.constant 0 : i32
    %51 = arith.cmpi ne, %arg1, %c0_i32_9 : i32
    %52 = arith.extui %51 : i1 to i32
    %c0_i32_10 = arith.constant 0 : i32
    %53 = arith.cmpi ne, %52, %c0_i32_10 : i32
    scf.if %53 {
      %c0_13 = arith.constant 0 : index
      %c0_14 = arith.constant 0 : index
      %57 = vector.load %arg5[%c0_13, %c0_14] : memref<16x1xf32, #tpu.memory_space<vmem>>, vector<16x1xf32>
      %cst_15 = arith.constant dense<0.000000e+00> : vector<16xf32>
      %58 = vector.multi_reduction <add>, %47, %cst_15 [1] : vector<16x128xf32> to vector<16xf32>
      %59 = vector.shape_cast %58 : vector<16xf32> to vector<16x1xf32>
      %60 = arith.addf %57, %59 : vector<16x1xf32>
      %c0_16 = arith.constant 0 : index
      %c0_17 = arith.constant 0 : index
      %61 = vector.load %arg5[%c0_16, %c0_17] : memref<16x1xf32, #tpu.memory_space<vmem>>, vector<16x1xf32>
      tpu.vector_store %arg5[%c0_16, %c0_17], %60 {strides = array<i32>} : memref<16x1xf32, #tpu.memory_space<vmem>>, vector<16x1xf32>,
    } else {
    }
    %c0_i32_11 = arith.constant 0 : i32
    %54 = arith.cmpi eq, %arg1, %c0_i32_11 : i32
    %55 = arith.extui %54 : i1 to i32
    %c0_i32_12 = arith.constant 0 : i32
    %56 = arith.cmpi ne, %55, %c0_i32_12 : i32
    scf.if %56 {
      %c0_13 = arith.constant 0 : index
      %c0_14 = arith.constant 0 : index
      %57 = vector.load %arg5[%c0_13, %c0_14] : memref<16x1xf32, #tpu.memory_space<vmem>>, vector<16x1xf32>
      %58 = vector.shape_cast %57 : vector<16x1xf32> to vector<1x16x1xf32>
      %cst_15 = arith.constant dense<0.000000e+00> : vector<1xf32>
      %59 = vector.multi_reduction <add>, %58, %cst_15 [1, 2] : vector<1x16x1xf32> to vector<1xf32>
      %60 = vector.shape_cast %59 : vector<1xf32> to vector<1x1x1xf32>
      %61 = vector.extract %60[0, 0, 0] : f32 from vector<1x1x1xf32>
      %62 = vector.broadcast %61 : f32 to vector<8x128xf32>
      %c0_16 = arith.constant 0 : index
      %c0_17 = arith.constant 0 : index
      %63 = vector.load %arg4[%c0_16, %c0_17] : memref<8x128xf32, #tpu.memory_space<vmem>>, vector<8x128xf32>
      tpu.vector_store %arg4[%c0_16, %c0_17], %62 {strides = array<i32>} : memref<8x128xf32, #tpu.memory_space<vmem>>, vector<8x128xf32>,
    } else {
    }
    return
  }
  func.func @transform_0(%arg0: i32, %arg1: i32) -> (i32, i32) {
    %c0_i32 = arith.constant 0 : i32
    %c0_i32_0 = arith.constant 0 : i32
    return %arg0, %c0_i32 : i32, i32
  }
  func.func @transform_1(%arg0: i32, %arg1: i32) -> (i32, i32) {
    %c0_i32 = arith.constant 0 : i32
    %c0_i32_0 = arith.constant 0 : i32
    return %c0_i32, %arg1 : i32, i32
  }
  func.func @transform_2(%arg0: i32, %arg1: i32) -> (i32, i32) {
    %c0_i32 = arith.constant 0 : i32
    %c0_i32_0 = arith.constant 0 : i32
    return %arg0, %c0_i32 : i32, i32
  }
}

</mosaic_0001>

<llo_original>
// kernel: tpu_custom_call.1
$region0: #{tpu_custom_call.1}
  #allocation0 [shape = 'u32[]', space=smem, size = 0x4, offset = 0x4, fixed_abs, tag = 'smem constant byte address 0x4 - core index']
  #allocation1 [shape = 'u32[144,128]{1,0:T(1,128)}', space=vmem, size = 0x12000, scoped, tag = 'internal scratch']
  #allocation2 [shape = 'f32[16,1]{1,0:T(8,128)}', space=vmem, size = 0x2000, scoped, tag = 'scratch operand']
  %s0 = inlined_call_operand.vmem [shape: f32[16,4], index: 0, kind: input, shape index: {}]
  %s1 = inlined_call_operand.vmem [shape: f32[4,128], index: 1, kind: input, shape index: {}]
  %s2 = inlined_call_operand.hbm [shape: f32[8,128], index: 2, kind: output, shape index: {}]
  %s3 = sld [smem:[#allocation0]]
  $region34: #{tpu_custom_call.1} parent=0
    _
  %s5 = ssub.s32 1, %s3
  %s6 = scalar_select 0, %s5, %s3
  $region1: #{tpu_custom_call.1} parent=0
    #allocation3 [shape = 'u8[4096]{0}', space=vmem, size = 0x1000, scoped, tag = 'output window, operand 0, single buffered']
    #allocation4 [shape = 's32[1]{0}', space=sflag, size = 0x4, scoped, tag = 'scoped memory for tpu_custom_call.1']
    %7 = vsyncpa [#allocation4], 0
    // Predicated region
    $region2: #{tpu_custom_call.1} parent=1 // pred_check
      _
    $region3: #{tpu_custom_call.1} parent=1 // pred_check_branch
      %9 = sbr.rel (0) target = $region5
    $region4: #{tpu_custom_call.1} parent=1 // pred_region
      _
    $region5: #{tpu_custom_call.1} parent=1 // pred_fallthru
      _
    // Predicated region
    $region6: #{tpu_custom_call.1} parent=1 // pred_check
      _
    $region7: #{tpu_custom_call.1} parent=1 // pred_check_branch
      %11 = sbr.rel (0) target = $region9
    $region8: #{tpu_custom_call.1} parent=1 // pred_region
      _
    $region9: #{tpu_custom_call.1} parent=1 // pred_fallthru
      _
    %p12 = scmp.eq.s32.totalorder 0, 0
    // Predicated region
    $region10: #{tpu_custom_call.1} parent=1 // pred_check
      %p13 = pneg %p12
    $region11: #{tpu_custom_call.1} parent=1 // pred_check_branch
      %15 = sbr.rel (%p13) target = $region13
    $region12: #{tpu_custom_call.1} parent=1 // pred_region
      %vm16 = vcmask 7168
      %17 = vst.msk [vmem:[#allocation2] sm:$0xff] %vm16, 0.0
      %18 = vst.msk [vmem:[#allocation2 + $0x8] sm:$0xff] %vm16, 0.0
    $region13: #{tpu_custom_call.1} parent=1 // pred_fallthru
      _
    %v19 = vld [vmem:[%s0] sm:$0xff]
    %v20 = vld [vmem:[%s0 + $0x8] sm:$0xff]
    %v21 = vld [vmem:[%s1] sm:$0xf]
    %24 = vrot.lane.b32.xlu0 %v19, 2
    %v25 = vpop.permute.xlu0 %24
    %26 = vrot.lane.b32.xlu0 %v20, 2
    %v27 = vpop.permute.xlu0 %26
    %v30 = vsub.f32 %v19, %v25
    %v31 = vsub.f32 %v20, %v27
    %34 = vrot.lane.b32.xlu0 %v30, 127
    %v35 = vpop.permute.xlu0 %34
    %36 = vrot.lane.b32.xlu0 %v31, 127
    %v37 = vpop.permute.xlu0 %36
    %v40 = vmul.f32 %v30, %v35
    %v41 = vmul.f32 %v31, %v37
    %v43 = vrot.slane %v21, 6
    %v45 = vsub.f32 %v21, %v43
    %v47 = vrot.slane %v45, 1
    %v49 = vmul.f32 %v45, %v47
    %50 = vset.pattern.permute.xlu0 2
    %51 = vperm.xlu0 %50, %v19
    %v52 = vpop.permute.xlu0 %51
    %54 = vset.pattern.permute.xlu0 2
    %55 = vperm.xlu0 %54, %v20
    %v56 = vpop.permute.xlu0 %55
    %v58 = vlaneseq
    %v59 = vshrl.u32 %v58, 7
    %v60 = vsub.s32 2, %v59
    %v61 = vrot.slane %v21, %v60
    %v62 = vmin.f32 %v52, %v61
    %v63 = vmin.f32 %v56, %v61
    %64 = vset.pattern.permute.xlu0 0
    %65 = vperm.xlu0 %64, %v19
    %v66 = vpop.permute.xlu0 %65
    %68 = vset.pattern.permute.xlu0 0
    %69 = vperm.xlu0 %68, %v20
    %v70 = vpop.permute.xlu0 %69
    %v72 = vlaneseq
    %v73 = vshrl.u32 %v72, 7
    %v74 = vsub.s32 0, %v73
    %v75 = vrot.slane %v21, %v74
    %v76 = vmax.f32 %v66, %v75
    %v77 = vmax.f32 %v70, %v75
    %v78 = vsub.f32 %v62, %v76
    %v79 = vsub.f32 %v63, %v77
    %v80 = vmax.f32 %v78, 0.0
    %v81 = vmax.f32 %v79, 0.0
    %82 = vset.pattern.permute.xlu0 3
    %83 = vperm.xlu0 %82, %v19
    %v84 = vpop.permute.xlu0 %83
    %86 = vset.pattern.permute.xlu0 3
    %87 = vperm.xlu0 %86, %v20
    %v88 = vpop.permute.xlu0 %87
    %v90 = vlaneseq
    %v91 = vshrl.u32 %v90, 7
    %v92 = vsub.s32 3, %v91
    %v93 = vrot.slane %v21, %v92
    %v94 = vmin.f32 %v84, %v93
    %v95 = vmin.f32 %v88, %v93
    %96 = vset.pattern.permute.xlu0 1
    %97 = vperm.xlu0 %96, %v19
    %v98 = vpop.permute.xlu0 %97
    %100 = vset.pattern.permute.xlu0 1
    %101 = vperm.xlu0 %100, %v20
    %v102 = vpop.permute.xlu0 %101
    %v104 = vlaneseq
    %v105 = vshrl.u32 %v104, 7
    %v106 = vsub.s32 1, %v105
    %v107 = vrot.slane %v21, %v106
    %v108 = vmax.f32 %v98, %v107
    %v109 = vmax.f32 %v102, %v107
    %v110 = vsub.f32 %v94, %v108
    %v111 = vsub.f32 %v95, %v109
    %v112 = vmax.f32 %v110, 0.0
    %v113 = vmax.f32 %v111, 0.0
    %v114 = vmul.f32 %v80, %v112
    %v115 = vmul.f32 %v81, %v113
    %117 = vset.pattern.permute.xlu0 2
    %118 = vperm.xlu0 %117, %v40
    %v119 = vpop.permute.xlu0 %118
    %122 = vset.pattern.permute.xlu0 2
    %123 = vperm.xlu0 %122, %v41
    %v124 = vpop.permute.xlu0 %123
    %v126 = vlaneseq
    %v127 = vshrl.u32 %v126, 7
    %v128 = vsub.s32 2, %v127
    %v129 = vrot.slane %v49, %v128
    %v130 = vadd.f32 %v119, %v129
    %v131 = vadd.f32 %v124, %v129
    %v132 = vsub.f32 %v130, %v114
    %v133 = vsub.f32 %v131, %v115
    %v134 = vrcp.pop %v132
    %v135 = vrcp.pop %v133
    %v136 = vmul.f32 %v114, %v134
    %v137 = vmul.f32 %v115, %v135
    %v138 = vmax.f32 %v136, 0.0
    %v139 = vmax.f32 %v137, 0.0
    %v140 = vmin.f32 %v138, 1.0
    %v141 = vmin.f32 %v139, 1.0
    // Predicated region
    $region14: #{tpu_custom_call.1} parent=1 // pred_check
      %p142 = pneg %p12
    $region15: #{tpu_custom_call.1} parent=1 // pred_check_branch
      %144 = sbr.rel (%p142) target = $region17
    $region16: #{tpu_custom_call.1} parent=1 // pred_region
      %s145 = smul.u32 0, 128
      %v146 = vlaneseq
      %v147 = vand.u32 %v146, 127
      %v148 = vstv %s145
      %v149 = vadd.s32 %v148, %v147
      %vm150 = vcmp.lt.s32.totalorder %v149, 8
      %v151 = vsel %vm150, 1, 0
      %vm152 = vcmp.eq.s32.totalorder %v151, 1
      %v153 = vsel %vm152, %v140, 0.0
      %v154 = vsel %vm152, %v141, 0.0
      %v155 = vld [vmem:[#allocation2] sm:$0xff]
      %v156 = vld [vmem:[#allocation2 + $0x8] sm:$0xff]
      %157 = vadd.xlane.f32.xlu0 %v153
      %v158 = vpop.xlane.xlu0 %157
      %159 = vadd.xlane.f32.xlu0 %v154
      %v160 = vpop.xlane.xlu0 %159
      %v161 = vadd.f32 %v155, %v158
      %v162 = vadd.f32 %v156, %v160
      %vm163 = vcmask 7168
      %164 = vst.msk [vmem:[#allocation2] sm:$0xff] %vm163, %v161
      %165 = vst.msk [vmem:[#allocation2 + $0x8] sm:$0xff] %vm163, %v162
    $region17: #{tpu_custom_call.1} parent=1 // pred_fallthru
      _
    %p166 = scmp.ne.s32.totalorder 0, 0
    // Predicated region
    $region18: #{tpu_custom_call.1} parent=1 // pred_check
      %p167 = pneg %p166
    $region19: #{tpu_custom_call.1} parent=1 // pred_check_branch
      %169 = sbr.rel (%p167) target = $region21
    $region20: #{tpu_custom_call.1} parent=1 // pred_region
      %v170 = vld [vmem:[#allocation2] sm:$0xff]
      %v171 = vld [vmem:[#allocation2 + $0x8] sm:$0xff]
      %172 = vadd.xlane.f32.xlu0 %v140
      %v173 = vpop.xlane.xlu0 %172
      %174 = vadd.xlane.f32.xlu0 %v141
      %v175 = vpop.xlane.xlu0 %174
      %v176 = vadd.f32 %v170, %v173
      %v177 = vadd.f32 %v171, %v175
      %vm178 = vcmask 7168
      %179 = vst.msk [vmem:[#allocation2] sm:$0xff] %vm178, %v176
      %180 = vst.msk [vmem:[#allocation2 + $0x8] sm:$0xff] %vm178, %v177
    $region21: #{tpu_custom_call.1} parent=1 // pred_fallthru
      _
    // Predicated region
    $region22: #{tpu_custom_call.1} parent=1 // pred_check
      %p181 = pneg %p12
    $region23: #{tpu_custom_call.1} parent=1 // pred_check_branch
      %183 = sbr.rel (%p181) target = $region25
    $region24: #{tpu_custom_call.1} parent=1 // pred_region
      %v184 = vld [vmem:[#allocation2] sm:$0xff]
      %v185 = vld [vmem:[#allocation2 + $0x8] sm:$0xff]
      %vm186 = vcmask 7168
      %v187 = vsel %vm186, %v184, 0.0
      %v188 = vsel %vm186, %v185, 0.0
      %v189 = vadd.f32 %v187, %v188
      %190 = vadd.xlane.f32.xlu0 %v189
      %v191 = vpop.xlane.xlu0 %190
      %v192 = vrot.slane %v191, 4
      %v193 = vadd.f32 %v191, %v192
      %v194 = vrot.slane %v193, 2
      %v195 = vadd.f32 %v193, %v194
      %v196 = vrot.slane %v195, 1
      %v197 = vadd.f32 %v195, %v196
      %s198 = vtos %v197
      %v199 = vstv %s198
      %200 = vst [vmem:[#allocation3] sm:$0xff] %v199
    $region25: #{tpu_custom_call.1} parent=1 // pred_fallthru
      _
    // Predicated region
    $region26: #{tpu_custom_call.1} parent=1 // pred_check
      _
    $region27: #{tpu_custom_call.1} parent=1 // pred_check_branch
      %202 = sbr.rel (0) target = $region29
    $region28: #{tpu_custom_call.1} parent=1 // pred_region
      %s204 = ssub.s32 128, 128
      %205 = vsyncadd [#allocation4], %s204
      %s207 = sshll.u32 [#allocation3], 4
      %s208 = int_to_ptr.vmem [resolvable:$true] %s207
      %210 = dma.vmem_to_hbm [thread:$0]  %s208, 128, %s2, [#allocation4]
    $region29: #{tpu_custom_call.1} parent=1 // pred_fallthru
      _
    // Predicated region
    $region30: #{tpu_custom_call.1} parent=1 // pred_check
      _
    $region31: #{tpu_custom_call.1} parent=1 // pred_check_branch
      %212 = sbr.rel (0) target = $region33
    $region32: #{tpu_custom_call.1} parent=1 // pred_region
      %213 = dma.done [#allocation4], 128
    $region33: #{tpu_custom_call.1} parent=1 // pred_fallthru
      _
    %214 = vsyncpa [#allocation4], 1

</llo_original>
